<compile_context>
chip_gen: v7x
topology: tpu7x:2x2x1
jax: 0.10.0
libtpu: 0.0.40
codegen_flags: <defaults>
</compile_context>

<pallas_src>
import jax
import jax.numpy as jnp
from jax import lax
from jax.experimental import pallas as pl
from jax.experimental.pallas import tpu as pltpu


def _vmem_capacity_bytes():
    """Physical VMEM of the local TPU generation (conservative fallback)."""
    try:
        cap = int(pltpu.get_tpu_info().vmem_capacity_bytes)
        if cap > 0:
            return cap
    except Exception:
        pass
    return 64 * 1024 * 1024  # v7x-safe fallback


def _make_ce_kernel(*, C, c_tile, tl, HW, s_per_group, n_class_chunks):
    """Builds the kernel body; all static configuration is closed over."""
    single_chunk = (c_tile == C)

    def kernel(logits_ref, labels_ref, out_ref, *scratch):
        # grid = (batch, spatial_group, spatial_tile, class_chunk)
        s = pl.program_id(1)
        t = pl.program_id(2)
        kc = pl.program_id(3)

        # Zero the resident per-(batch, group) accumulator row exactly once.
        @pl.when((t == 0) & (kc == 0))
        def _():
            out_ref[...] = jnp.zeros_like(out_ref)

        x = logits_ref[...]                                  # (1, c_tile, tl), input dtype
        labels = labels_ref[...].astype(jnp.int32)           # (1, 1, tl) widened in-kernel

        # Global class index of every sublane row of this chunk.
        cls = kc * c_tile + lax.broadcasted_iota(jnp.int32, x.shape, 1)

        # Target-class logit via one-hot select (exactly one hit over all
        # chunks); stays in input precision, only the (1,1,tl) result widens.
        picked = jnp.sum(jnp.where(cls == labels, x, jnp.zeros_like(x)),
                         axis=1, keepdims=True).astype(jnp.float32)

        # Lane-validity: logical pixel index < H*W.  Handles the ragged
        # (unpadded) last spatial tile and the clamped dummy tiles of the
        # 2-way spatial split.
        tile_idx = s * s_per_group + t
        lane = lax.broadcasted_iota(jnp.int32, (1, 1, tl), 2)
        valid = (tile_idx * tl + lane) < HW

        if single_chunk:
            # Whole class axis in one block: direct stable log-sum-exp.
            m = jnp.max(x, axis=1, keepdims=True)            # max exact in input dtype
            e = jnp.exp((x - m).astype(jnp.float32))         # widen only at the exp
            lse = jnp.log(jnp.sum(e, axis=1, keepdims=True)) + m.astype(jnp.float32)
            loss = lse - picked
            out_ref[...] += jnp.where(valid, loss, 0.0)
        else:
            # Online log-sum-exp across class chunks (vocabulary-sized C).
            m_ref, l_ref, p_ref = scratch

            @pl.when(kc == 0)
            def _():
                m_ref[...] = jnp.full(m_ref.shape, -jnp.inf, m_ref.dtype)
                l_ref[...] = jnp.zeros(l_ref.shape, l_ref.dtype)
                p_ref[...] = jnp.zeros(p_ref.shape, p_ref.dtype)

            xm = jnp.where(cls < C, x, -jnp.inf)             # mask ragged class rows
            chunk_max = jnp.max(xm, axis=1, keepdims=True).astype(jnp.float32)

            m_old = m_ref[...]
            m_new = jnp.maximum(m_old, chunk_max)
            alpha = jnp.exp(m_old - m_new)
            e = jnp.exp((xm - m_new.astype(x.dtype)).astype(jnp.float32))
            l_new = l_ref[...] * alpha + jnp.sum(e, axis=1, keepdims=True)
            p_new = p_ref[...] + picked

            m_ref[...] = m_new
            l_ref[...] = l_new
            p_ref[...] = p_new

            @pl.when(kc == n_class_chunks - 1)
            def _():
                loss = (m_new + jnp.log(l_new)) - p_new
                out_ref[...] += jnp.where(valid, loss, 0.0)

    return kernel


def cross_entropy_loss(logits, labels, *, block_bytes=None):
    """torch.nn.CrossEntropyLoss() forward (mean reduction, class-index targets).

    logits: (N, C, H, W) float      labels: (N, H, W) integer class indices
    Returns the scalar float32 mean loss over all N*H*W pixels.
    """
    N, C, H, W = logits.shape
    HW = H * W
    M = N * HW
    itemsize = logits.dtype.itemsize

    # Generation-aware budgets (v5e/v6e: 128 MiB physical VMEM; v7x: 64 MiB).
    big_vmem = _vmem_capacity_bytes() >= 100 * 1024 * 1024
    if block_bytes is None:
        block_bytes = (6 if big_vmem else 2) * 1024 * 1024
    vmem_limit = (64 if big_vmem else 32) * 1024 * 1024

    # Budget in *elements* so the f32 temporaries (exp, iota, selects) stay at
    # ~block_bytes each regardless of the input dtype.
    blk_elems = max(block_bytes // 4, 8 * 128)

    # Class-axis chunking for large C (online LSE inside the kernel).
    sub = max(8, 32 // itemsize)                 # sublane granularity per dtype
    if C * 128 <= blk_elems:
        c_tile = C                               # whole class axis per block
    else:
        c_tile = max(sub, (blk_elems // 512) // sub * sub)   # keep >=512 lanes
        if c_tile >= C:
            c_tile = C
    n_class_chunks = pl.cdiv(C, c_tile)

    # Spatial (lane) tile — no padding; ragged last tile masked in-kernel.
    if HW < 128:
        tl = HW
    else:
        tl = min(blk_elems // c_tile, 65536, (HW // 128) * 128)
        tl = max(128, tl // 128 * 128)
    n_tiles = pl.cdiv(HW, tl)

    # 2-way spatial split keeps both TensorCores busy on v7x even when N == 1.
    n_groups = 2 if n_tiles >= 2 else 1
    s_per_group = pl.cdiv(n_tiles, n_groups)
    last_block = n_tiles - 1

    x = logits.reshape(N, C, HW)                 # free contiguous reshape (no transpose)
    y = labels.reshape(N, 1, HW)                 # DMA labels at native integer width
    if not (jnp.issubdtype(y.dtype, jnp.integer) and y.dtype.itemsize <= 4):
        y = y.astype(jnp.int32)

    def logits_index(n, s, t, kc):
        return (n, kc, jnp.minimum(s * s_per_group + t, last_block))

    def labels_index(n, s, t, kc):
        return (n, 0, jnp.minimum(s * s_per_group + t, last_block))

    def out_index(n, s, t, kc):
        return (n * n_groups + s, 0, 0)

    logits_spec_kwargs = {}
    scratch_shapes = []
    if n_class_chunks > 1:
        # Large-C path: deeper buffering keeps the DMA queue full while each
        # block is many short strided class rows (most valuable on v7x).
        logits_spec_kwargs["pipeline_mode"] = pl.Buffered(3)
        scratch_shapes = [pltpu.VMEM((1, 1, tl), jnp.float32)] * 3

    kernel = _make_ce_kernel(C=C, c_tile=c_tile, tl=tl, HW=HW,
                             s_per_group=s_per_group,
                             n_class_chunks=n_class_chunks)

    cost = pl.CostEstimate(
        flops=8 * M * C + 16 * M,
        transcendentals=M * C + 2 * M,
        bytes_accessed=N * C * HW * itemsize + N * HW * y.dtype.itemsize
        + N * n_groups * tl * 4,
    )

    partial = pl.pallas_call(
        kernel,
        out_shape=jax.ShapeDtypeStruct((N * n_groups, 1, tl), jnp.float32),
        grid_spec=pltpu.PrefetchScalarGridSpec(
            num_scalar_prefetch=0,
            grid=(N, n_groups, s_per_group, n_class_chunks),
            in_specs=[
                pl.BlockSpec((1, c_tile, tl), logits_index, **logits_spec_kwargs),
                pl.BlockSpec((1, 1, tl), labels_index),
            ],
            out_specs=pl.BlockSpec((1, 1, tl), out_index),
            scratch_shapes=scratch_shapes,
        ),
        compiler_params=pltpu.CompilerParams(
            dimension_semantics=("parallel", "parallel", "arbitrary", "arbitrary"),
            vmem_limit_bytes=vmem_limit,
        ),
        cost_estimate=cost,
    )(x, y)

    # Tiny epilogue outside the kernel: sum per-lane partial sums, mean over M.
    return jnp.sum(partial) * jnp.float32(1.0 / M)


def _reference_ce(logits, labels):
    """Plain-JAX reference (matches torch.nn.CrossEntropyLoss defaults)."""
    N, C, H, W = logits.shape
    x = jnp.transpose(logits, (0, 2, 3, 1)).reshape(-1, C).astype(jnp.float32)
    y = labels.reshape(-1).astype(jnp.int32)
    logp = jax.nn.log_softmax(x, axis=-1)
    nll = -jnp.take_along_axis(logp, y[:, None], axis=-1)[:, 0]
    return jnp.mean(nll)


if __name__ == "__main__":
    key = jax.random.PRNGKey(0)
    k1, k2, k3, k4 = jax.random.split(key, 4)

    # Case 1: small segmentation-style problem (NCHW logits, NHW int labels),
    # single class block, narrow (int8) labels DMA'd at 1 B/pixel.
    N, C, H, W = 2, 4, 16, 16
    logits1 = jax.random.normal(k1, (N, C, H, W), dtype=jnp.float32)
    labels1 = jax.random.randint(k2, (N, H, W), 0, C).astype(jnp.int8)
    loss1 = jax.block_until_ready(cross_entropy_loss(logits1, labels1))
    ref1 = jax.block_until_ready(_reference_ce(logits1, labels1))
    assert jnp.allclose(loss1, ref1, rtol=1e-4, atol=1e-5), (loss1, ref1)

    # Case 2: forces the large-C online-LSE class-chunk path, the unpadded
    # ragged last spatial tile, and the 2-way spatial split (tiny block budget).
    N2, C2, H2, W2 = 1, 84, 24, 24
    logits2 = jax.random.normal(k3, (N2, C2, H2, W2), dtype=jnp.float32)
    labels2 = jax.random.randint(k4, (N2, H2, W2), 0, C2).astype(jnp.int16)
    loss2 = jax.block_until_ready(
        cross_entropy_loss(logits2, labels2, block_bytes=8 * 1024))
    ref2 = jax.block_until_ready(_reference_ce(logits2, labels2))
    assert jnp.allclose(loss2, ref2, rtol=1e-4, atol=1e-4), (loss2, ref2)

    print("KERNEL_OK")
</pallas_src>

<mosaic_0001>
module attributes {stable_mosaic.version = 11 : i64} {
  func.func @kernel(%arg0: i32, %arg1: i32, %arg2: i32, %arg3: i32, %arg4: memref<1x4x256xf32, #tpu.memory_space<vmem>>, %arg5: memref<1x1x256xi8, #tpu.memory_space<vmem>>, %arg6: memref<1x1x256xf32, #tpu.memory_space<vmem>>) attributes {dimension_semantics = [#tpu.dimension_semantics<parallel>, #tpu.dimension_semantics<parallel>, #tpu.dimension_semantics<arbitrary>, #tpu.dimension_semantics<arbitrary>], iteration_bounds = array<i64: 2, 1, 1, 1>, scalar_prefetch = 0 : i64, scratch_operands = 0 : i64, tpu.core_type = #tpu.core_type<tc>, window_params = [{transform_indices = @transform_0, window_bounds = array<i64: 1, 4, 256>}, {transform_indices = @transform_1, window_bounds = array<i64: 1, 1, 256>}, {transform_indices = @transform_2, window_bounds = array<i64: 1, 1, 256>}]} {
    %c0_i32 = arith.constant 0 : i32
    %0 = arith.cmpi eq, %arg2, %c0_i32 : i32
    %c0_i32_0 = arith.constant 0 : i32
    %1 = arith.cmpi eq, %arg3, %c0_i32_0 : i32
    %2 = arith.andi %0, %1 : i1
    %3 = arith.extui %2 : i1 to i32
    %c0_i32_1 = arith.constant 0 : i32
    %4 = arith.cmpi ne, %3, %c0_i32_1 : i32
    scf.if %4 {
      %cst_18 = arith.constant 0.000000e+00 : f32
      %41 = vector.broadcast %cst_18 : f32 to vector<1x1x256xf32>
      %c0_19 = arith.constant 0 : index
      %c0_20 = arith.constant 0 : index
      %c0_21 = arith.constant 0 : index
      %42 = vector.load %arg6[%c0_19, %c0_20, %c0_21] : memref<1x1x256xf32, #tpu.memory_space<vmem>>, vector<1x1x256xf32>
      tpu.vector_store %arg6[%c0_19, %c0_20, %c0_21], %41 {strides = array<i32>} : memref<1x1x256xf32, #tpu.memory_space<vmem>>, vector<1x1x256xf32>,
    } else {
    }
    %c0 = arith.constant 0 : index
    %c0_2 = arith.constant 0 : index
    %c0_3 = arith.constant 0 : index
    %5 = vector.load %arg4[%c0, %c0_2, %c0_3] : memref<1x4x256xf32, #tpu.memory_space<vmem>>, vector<1x4x256xf32>
    %c0_4 = arith.constant 0 : index
    %c0_5 = arith.constant 0 : index
    %c0_6 = arith.constant 0 : index
    %6 = vector.load %arg5[%c0_4, %c0_5, %c0_6] : memref<1x1x256xi8, #tpu.memory_space<vmem>>, vector<1x1x256xi8>
    %7 = arith.extsi %6 : vector<1x1x256xi8> to vector<1x1x256xi32>
    %c4_i32 = arith.constant 4 : i32
    %8 = arith.muli %arg3, %c4_i32 : i32
    %9 = tpu.iota {dimensions = array<i32: 1>} : vector<1x4x256xi32>
    %10 = vector.broadcast %8 : i32 to vector<1x4x256xi32>
    %11 = arith.addi %10, %9 : vector<1x4x256xi32>
    %12 = vector.broadcast %7 : vector<1x1x256xi32> to vector<1x4x256xi32>
    %13 = arith.cmpi eq, %11, %12 : vector<1x4x256xi32>
    %cst = arith.constant 0.000000e+00 : f32
    %14 = vector.broadcast %cst : f32 to vector<1x4x256xf32>
    %15 = arith.select %13, %5, %14 : vector<1x4x256xi1>, vector<1x4x256xf32>
    %cst_7 = arith.constant dense<0.000000e+00> : vector<1x256xf32>
    %16 = vector.multi_reduction <add>, %15, %cst_7 [1] : vector<1x4x256xf32> to vector<1x256xf32>
    %17 = vector.shape_cast %16 : vector<1x256xf32> to vector<1x1x256xf32>
    %c1_i32 = arith.constant 1 : i32
    %18 = arith.muli %arg1, %c1_i32 : i32
    %19 = arith.addi %18, %arg2 : i32
    %20 = tpu.iota {dimensions = array<i32: 2>} : vector<1x1x256xi32>
    %c256_i32 = arith.constant 256 : i32
    %21 = arith.muli %19, %c256_i32 : i32
    %22 = vector.broadcast %21 : i32 to vector<1x1x256xi32>
    %23 = arith.addi %22, %20 : vector<1x1x256xi32>
    %c256_i32_8 = arith.constant 256 : i32
    %24 = vector.broadcast %c256_i32_8 : i32 to vector<1x1x256xi32>
    %25 = arith.cmpi slt, %23, %24 : vector<1x1x256xi32>
    %cst_9 = arith.constant dense<0xFF800000> : vector<1x256xf32>
    %26 = vector.multi_reduction <maximumf>, %5, %cst_9 [1] : vector<1x4x256xf32> to vector<1x256xf32>
    %27 = vector.shape_cast %26 : vector<1x256xf32> to vector<1x1x256xf32>
    %28 = vector.broadcast %27 : vector<1x1x256xf32> to vector<1x4x256xf32>
    %29 = arith.subf %5, %28 : vector<1x4x256xf32>
    %30 = math.exp %29 : vector<1x4x256xf32>
    %cst_10 = arith.constant dense<0.000000e+00> : vector<1x256xf32>
    %31 = vector.multi_reduction <add>, %30, %cst_10 [1] : vector<1x4x256xf32> to vector<1x256xf32>
    %32 = vector.shape_cast %31 : vector<1x256xf32> to vector<1x1x256xf32>
    %33 = math.log %32 : vector<1x1x256xf32>
    %34 = arith.addf %33, %27 : vector<1x1x256xf32>
    %35 = arith.subf %34, %17 : vector<1x1x256xf32>
    %c0_11 = arith.constant 0 : index
    %c0_12 = arith.constant 0 : index
    %c0_13 = arith.constant 0 : index
    %36 = vector.load %arg6[%c0_11, %c0_12, %c0_13] : memref<1x1x256xf32, #tpu.memory_space<vmem>>, vector<1x1x256xf32>
    %cst_14 = arith.constant 0.000000e+00 : f32
    %37 = vector.broadcast %cst_14 : f32 to vector<1x1x256xf32>
    %38 = arith.select %25, %35, %37 : vector<1x1x256xi1>, vector<1x1x256xf32>
    %39 = arith.addf %36, %38 : vector<1x1x256xf32>
    %c0_15 = arith.constant 0 : index
    %c0_16 = arith.constant 0 : index
    %c0_17 = arith.constant 0 : index
    %40 = vector.load %arg6[%c0_15, %c0_16, %c0_17] : memref<1x1x256xf32, #tpu.memory_space<vmem>>, vector<1x1x256xf32>
    tpu.vector_store %arg6[%c0_15, %c0_16, %c0_17], %39 {strides = array<i32>} : memref<1x1x256xf32, #tpu.memory_space<vmem>>, vector<1x1x256xf32>,
    return
  }
  func.func @transform_0(%arg0: i32, %arg1: i32, %arg2: i32, %arg3: i32) -> (i32, i32, i32) {
    %c1_i32 = arith.constant 1 : i32
    %0 = arith.muli %arg1, %c1_i32 : i32
    %1 = arith.addi %0, %arg2 : i32
    %c0_i32 = arith.constant 0 : i32
    %2 = arith.minsi %1, %c0_i32 : i32
    %c0_i32_0 = arith.constant 0 : i32
    return %arg0, %arg3, %2 : i32, i32, i32
  }
  func.func @transform_1(%arg0: i32, %arg1: i32, %arg2: i32, %arg3: i32) -> (i32, i32, i32) {
    %c1_i32 = arith.constant 1 : i32
    %0 = arith.muli %arg1, %c1_i32 : i32
    %1 = arith.addi %0, %arg2 : i32
    %c0_i32 = arith.constant 0 : i32
    %2 = arith.minsi %1, %c0_i32 : i32
    %c0_i32_0 = arith.constant 0 : i32
    %c0_i32_1 = arith.constant 0 : i32
    return %arg0, %c0_i32_0, %2 : i32, i32, i32
  }
  func.func @transform_2(%arg0: i32, %arg1: i32, %arg2: i32, %arg3: i32) -> (i32, i32, i32) {
    %c1_i32 = arith.constant 1 : i32
    %0 = arith.muli %arg0, %c1_i32 : i32
    %1 = arith.addi %0, %arg1 : i32
    %c0_i32 = arith.constant 0 : i32
    %c0_i32_0 = arith.constant 0 : i32
    %c0_i32_1 = arith.constant 0 : i32
    return %1, %c0_i32, %c0_i32_0 : i32, i32, i32
  }
}

</mosaic_0001>

<llo_original>
// kernel: tpu_custom_call.1
$region0: #{tpu_custom_call.1}
  #allocation0 [shape = 'u32[]', space=smem, size = 0x4, offset = 0x4, fixed_abs, tag = 'smem constant byte address 0x4 - core index']
  #allocation1 [shape = 'u32[144,128]{1,0:T(1,128)}', space=vmem, size = 0x12000, scoped, tag = 'internal scratch']
  %s0 = inlined_call_operand.hbm [shape: f32[2,4,256], index: 0, kind: input, shape index: {}]
  %s1 = inlined_call_operand.vmem [shape: s8[2,1,256], index: 1, kind: input, shape index: {}]
  %s2 = inlined_call_operand.hbm [shape: f32[2,1,256], index: 2, kind: output, shape index: {}]
  %s3 = sld [smem:[#allocation0]]
  $region49: #{tpu_custom_call.1} parent=0
    _
  %s5 = ssub.s32 1, %s3
  %s6 = scalar_select 0, %s5, %s3
  $region1: #{tpu_custom_call.1} parent=0
    #allocation2 [shape = 'u8[8192]{0}', space=vmem, size = 0x2000, scoped, tag = 'input window, operand 0']
    #allocation3 [shape = 's32[2]{0}', space=sflag, size = 0x8, scoped, tag = 'scoped memory for tpu_custom_call.1']
    #allocation4 [shape = 's32[2]{0}', space=sflag, size = 0x8, scoped, tag = 'scoped memory for tpu_custom_call.1']
    #allocation5 [shape = 'u8[2048]{0}', space=vmem, size = 0x800, scoped, tag = 'output window, operand 0']
    %7 = vsyncpa [#allocation3], 0
    %s8 = scalar_lea.sflag [#allocation3], 1
    %9 = vsyncpa %s8, 0
    %10 = vsyncpa [#allocation4], 0
    %s11 = scalar_lea.sflag [#allocation4], 1
    %12 = vsyncpa %s11, 0
    loop: start=0, step=1, limit=4
    $region2: #{tpu_custom_call.1} parent=1 // loop_pre_header
      _
    $region3: #{tpu_custom_call.1} parent=1 // loop_header
      %s14 = sphi 0, %s18
      %p15 = scmp.ge.s32.totalorder %s14, 4
      %s21 = sphi 0, %s47
      %s22 = sphi 0, %s43
      %s23 = sphi 0, %s39
      %s24 = sphi 0, %s35
      %s25 = sphi 0, %s21
      %s26 = sphi 0, %s22
      %s27 = sphi 0, %s23
      %s28 = sphi 0, %s24
      %s29 = sphi 0, %s25
      %s30 = sphi 0, %s26
      %s31 = sphi 0, %s27
      %s32 = sphi 0, %s28
      %s60 = sphi 0, %s62
      %s63 = sphi 0, %s60
      %s64 = sphi 0, %s63
      %s80 = sphi 0, %s64
      %s94 = sphi 0, %s96
      %s97 = sphi 0, %s94
      %s98 = sphi 0, %s97
      %s114 = sphi 0, %s98
      %s122 = sphi 0, %s124
      %s125 = sphi 0, %s122
      %s126 = sphi 0, %s125
      %s142 = sphi 0, %s126
    $region4: #{tpu_custom_call.1} parent=1 // loop_header_branch
      %17 = sbr.rel (%p15) target = $region8
    $region5: #{tpu_custom_call.1} parent=1 // loop_body
      %s19 = ssub.s32 %s14, 1
      %s20 = ssub.s32 %s14, 2
      %s33 = sadd.s32 1, %s24
      %p34 = scmp.ge.s32.totalorder %s33, 1
      %s35 = scalar_select %p34, 0, %s33
      %s36 = sadd.s32 1, %s23
      %s37 = scalar_select %p34, %s36, %s23
      %p38 = scmp.ge.s32.totalorder %s37, 1
      %s39 = scalar_select %p38, 0, %s37
      %s40 = sadd.s32 1, %s22
      %s41 = scalar_select %p38, %s40, %s22
      %p42 = scmp.ge.s32.totalorder %s41, 1
      %s43 = scalar_select %p42, 0, %s41
      %s44 = sadd.s32 1, %s21
      %s45 = scalar_select %p42, %s44, %s21
      %p46 = scmp.ge.s32.totalorder %s45, 2
      %s47 = scalar_select %p46, 0, %s45
      %s48 = sadd.s32 %s22, %s23
      %p49 = scmp.lt.s32.totalorder %s48, 0
      %s50 = scalar_select %p49, %s48, 0
      %s51 = sadd.s32 %s43, %s39
      %p52 = scmp.lt.s32.totalorder %s51, 0
      %s53 = scalar_select %p52, %s51, 0
      %s54 = ssub.s32 %s21, %s47
      %s55 = ssub.s32 %s24, %s35
      %s56 = sor.u32 %s54, %s55
      %s57 = ssub.s32 %s50, %s53
      %s58 = sor.u32 %s56, %s57
      %p59 = scmp.eq.s32.totalorder %s58, 0
      %s61 = sadd.s32 %s60, 1
      %s62 = scalar_select %p59, %s60, %s61
      %p65 = pneg %p59
      %p66 = scmp.eq.s32.totalorder %s14, 1
      %p67 = por %p65, %p66
      %p68 = scmp.ne.s32.totalorder %s60, %s63
      %p69 = scmp.eq.s32.totalorder %s14, 0
      %p70 = por %p68, %p69
      %p71 = scmp.ne.s32.totalorder %s60, %s63
      %p72 = scmp.eq.s32.totalorder %s19, 1
      %p73 = por %p71, %p72
      %p74 = scmp.ne.s32.totalorder %s63, %s64
      %p75 = scmp.eq.s32.totalorder %s19, 0
      %p76 = por %p74, %p75
      %p77 = scmp.ne.s32.totalorder %s63, %s64
      %p78 = scmp.eq.s32.totalorder %s20, 1
      %p79 = por %p77, %p78
      %p81 = scmp.ne.s32.totalorder %s64, %s80
      %p82 = scmp.eq.s32.totalorder %s20, 0
      %p83 = por %p81, %p82
      %s84 = sadd.s32 %s22, %s23
      %p85 = scmp.lt.s32.totalorder %s84, 0
      %s86 = scalar_select %p85, %s84, 0
      %s87 = sadd.s32 %s43, %s39
      %p88 = scmp.lt.s32.totalorder %s87, 0
      %s89 = scalar_select %p88, %s87, 0
      %s90 = ssub.s32 %s21, %s47
      %s91 = ssub.s32 %s86, %s89
      %s92 = sor.u32 %s90, %s91
      %p93 = scmp.eq.s32.totalorder %s92, 0
      %s95 = sadd.s32 %s94, 1
      %s96 = scalar_select %p93, %s94, %s95
      %p99 = pneg %p93
      %p100 = scmp.eq.s32.totalorder %s14, 1
      %p101 = por %p99, %p100
      %p102 = scmp.ne.s32.totalorder %s94, %s97
      %p103 = scmp.eq.s32.totalorder %s14, 0
      %p104 = por %p102, %p103
      %p105 = scmp.ne.s32.totalorder %s94, %s97
      %p106 = scmp.eq.s32.totalorder %s19, 1
      %p107 = por %p105, %p106
      %p108 = scmp.ne.s32.totalorder %s97, %s98
      %p109 = scmp.eq.s32.totalorder %s19, 0
      %p110 = por %p108, %p109
      %p111 = scmp.ne.s32.totalorder %s97, %s98
      %p112 = scmp.eq.s32.totalorder %s20, 1
      %p113 = por %p111, %p112
      %p115 = scmp.ne.s32.totalorder %s98, %s114
      %p116 = scmp.eq.s32.totalorder %s20, 0
      %p117 = por %p115, %p116
      %s118 = sadd.s32 %s21, %s22
      %s119 = sadd.s32 %s47, %s43
      %s120 = ssub.s32 %s118, %s119
      %p121 = scmp.eq.s32.totalorder %s120, 0
      %s123 = sadd.s32 %s122, 1
      %s124 = scalar_select %p121, %s122, %s123
      %p127 = pneg %p121
      %p128 = scmp.eq.s32.totalorder %s14, 1
      %p129 = por %p127, %p128
      %p130 = scmp.ne.s32.totalorder %s122, %s125
      %p131 = scmp.eq.s32.totalorder %s14, 0
      %p132 = por %p130, %p131
      %p133 = scmp.ne.s32.totalorder %s122, %s125
      %p134 = scmp.eq.s32.totalorder %s19, 1
      %p135 = por %p133, %p134
      %p136 = scmp.ne.s32.totalorder %s125, %s126
      %p137 = scmp.eq.s32.totalorder %s19, 0
      %p138 = por %p136, %p137
      %p139 = scmp.ne.s32.totalorder %s125, %s126
      %p140 = scmp.eq.s32.totalorder %s20, 1
      %p141 = por %p139, %p140
      %p143 = scmp.ne.s32.totalorder %s126, %s142
      %p144 = scmp.eq.s32.totalorder %s20, 0
      %p145 = por %p143, %p144
      %p146 = scmp.le.s32.totalorder 1, %s14
      %p147 = scmp.lt.s32.totalorder %s14, 3
      %p148 = pnand %p146, %p147
      %p149 = pneg %p148
      // Predicated region
      $region9: #{tpu_custom_call.1} parent=5 // pred_check
        _
      $region10: #{tpu_custom_call.1} parent=5 // pred_check_branch
        %151 = sbr.rel (%p148) target = $region12
      $region11: #{tpu_custom_call.1} parent=5 // pred_region
        %s152 = ssub.s32 %s14, 1
      $region12: #{tpu_custom_call.1} parent=5 // pred_fallthru
        _
      %p153 = scmp.lt.s32.totalorder %s14, 2
      // Predicated region
      $region13: #{tpu_custom_call.1} parent=5 // pred_check
        %p154 = pneg %p153
      $region14: #{tpu_custom_call.1} parent=5 // pred_check_branch
        %156 = sbr.rel (%p154) target = $region16
      $region15: #{tpu_custom_call.1} parent=5 // pred_region
        // Predicated region
        $region17: #{tpu_custom_call.1} parent=15 // pred_check
          %p157 = pneg %p70
        $region18: #{tpu_custom_call.1} parent=15 // pred_check_branch
          %159 = sbr.rel (%p157) target = $region20
        $region19: #{tpu_custom_call.1} parent=15 // pred_region
          %s160 = sand.u32 %s60, 1
          %s161 = scalar_lea.sflag [#allocation3], %s160
          %s162 = sand.u32 %s60, 1
          %s163 = smul.addr %s162, 8
          %s164 = scalar_lea.vmem [#allocation2], %s163
          %s165 = sadd.s32 %s22, %s23
          %p166 = scmp.lt.s32.totalorder %s165, 0
          %s167 = scalar_select %p166, %s165, 0
          %s168 = smul.u32 2, %s167
          %s170 = ssub.s32 128, 128
          %171 = vsyncadd %s161, %s170
          %s172 = smul.addr %s24, 2
          %s173 = sadd.s32 %s168, %s172
          %s174 = smul.addr %s21, 2
          %s175 = sadd.s32 %s173, %s174
          %s176 = smul.addr %s175, 64
          %s177 = scalar_lea.hbm %s0, %s176
          %s179 = sshll.u32 %s164, 4
          %s180 = int_to_ptr.vmem [resolvable:$true] %s179
          %182 = dma.hbm_to_vmem [thread:$0]  %s177, 128, %s180, %s161
        $region20: #{tpu_custom_call.1} parent=15 // pred_fallthru
          _
        // Predicated region
        $region21: #{tpu_custom_call.1} parent=15 // pred_check
          %p183 = pneg %p104
        $region22: #{tpu_custom_call.1} parent=15 // pred_check_branch
          %185 = sbr.rel (%p183) target = $region24
        $region23: #{tpu_custom_call.1} parent=15 // pred_region
          %s186 = sadd.s32 %s22, %s23
          %p187 = scmp.lt.s32.totalorder %s186, 0
          %s188 = scalar_select %p187, %s186, 0
          %s189 = smul.u32 2, %s188
          %p190 = scmp.lt.s32.totalorder %s21, 1
          %s191 = scalar_select %p190, %s21, 1
          %p192 = scmp.lt.s32.totalorder %s189, 1
          %s193 = scalar_select %p192, %s189, 1
          %s194 = smul.addr %s191, 2
          %s195 = sadd.s32 %s193, %s194
          %s196 = scalar_lea.vmem %s1, %s195
          %s197 = sadd.s32 %s22, %s23
          %p198 = scmp.lt.s32.totalorder %s197, 0
          %s199 = scalar_select %p198, %s197, 0
          %s200 = smul.u32 2, %s199
        $region24: #{tpu_custom_call.1} parent=15 // pred_fallthru
          _
      $region16: #{tpu_custom_call.1} parent=5 // pred_fallthru
        _
      %p201 = scmp.le.s32.totalorder 1, %s14
      %p202 = scmp.lt.s32.totalorder %s14, 3
      %p203 = pnand %p201, %p202
      %p204 = pneg %p203
      // Predicated region
      $region25: #{tpu_custom_call.1} parent=5 // pred_check
        _
      $region26: #{tpu_custom_call.1} parent=5 // pred_check_branch
        %206 = sbr.rel (%p203) target = $region28
      $region27: #{tpu_custom_call.1} parent=5 // pred_region
        %s207 = ssub.s32 %s14, 1
        %s208 = sand.u32 %s63, 1
        %s209 = scalar_lea.sflag [#allocation3], %s208
        %s210 = sand.u32 %s63, 1
        %s211 = smul.addr %s210, 8
        %s212 = scalar_lea.vmem [#allocation2], %s211
        // Predicated region
        $region29: #{tpu_custom_call.1} parent=27 // pred_check
          %p213 = pneg %p76
        $region30: #{tpu_custom_call.1} parent=27 // pred_check_branch
          %215 = sbr.rel (%p213) target = $region32
        $region31: #{tpu_custom_call.1} parent=27 // pred_region
          %216 = dma.done %s209, 128
        $region32: #{tpu_custom_call.1} parent=27 // pred_fallthru
          _
        %s217 = sand.u32 %s63, 1
        %s218 = scalar_lea.sflag [#allocation3], %s217
        %s219 = sand.u32 %s63, 1
        %s220 = smul.addr %s219, 8
        %s221 = scalar_lea.vmem [#allocation2], %s220
        %p222 = pneg %p76
        %p223 = pneg %p73
        %s224 = sadd.s32 %s26, %s27
        %p225 = scmp.lt.s32.totalorder %s224, 0
        %s226 = scalar_select %p225, %s224, 0
        %s227 = smul.u32 2, %s226
        %p228 = scmp.lt.s32.totalorder %s25, 1
        %s229 = scalar_select %p228, %s25, 1
        %p230 = scmp.lt.s32.totalorder %s227, 1
        %s231 = scalar_select %p230, %s227, 1
        %s232 = smul.addr %s229, 2
        %s233 = sadd.s32 %s231, %s232
        %s234 = scalar_lea.vmem %s1, %s233
        %p235 = pneg %p110
        %p236 = pneg %p107
        %p237 = pneg %p138
        %p238 = pneg %p135
        %s239 = sand.u32 %s125, 1
        %s240 = scalar_lea.sflag [#allocation4], %s239
        %s241 = sand.u32 %s125, 1
        %s242 = smul.addr %s241, 2
        %s243 = scalar_lea.vmem [#allocation5], %s242
        %s244 = sadd.s32 %s26, %s27
        %p245 = scmp.lt.s32.totalorder %s244, 0
        %s246 = scalar_select %p245, %s244, 0
        %s247 = smul.u32 2, %s246
        %s248 = sadd.s32 %s26, %s27
        %p249 = scmp.lt.s32.totalorder %s248, 0
        %s250 = scalar_select %p249, %s248, 0
        %s251 = smul.u32 2, %s250
        %p252 = scmp.lt.s32.totalorder %s25, 1
        %s253 = scalar_select %p252, %s25, 1
        %p254 = scmp.lt.s32.totalorder %s251, 1
        %s255 = scalar_select %p254, %s251, 1
        %s256 = smul.addr %s253, 2
        %s257 = sadd.s32 %s255, %s256
        %s258 = scalar_lea.vmem %s1, %s257
        %s259 = sadd.s32 %s26, %s27
        %p260 = scmp.lt.s32.totalorder %s259, 0
        %s261 = scalar_select %p260, %s259, 0
        %s262 = smul.u32 2, %s261
        %s263 = sadd.s32 %s25, %s26
        %p264 = scmp.eq.s32.totalorder %s27, 0
        %p265 = scmp.eq.s32.totalorder %s28, 0
        %p266 = pnand %p264, %p265
        %p267 = pneg %p266
        // Predicated region
        $region33: #{tpu_custom_call.1} parent=27 // pred_check
          _
        $region34: #{tpu_custom_call.1} parent=27 // pred_check_branch
          %269 = sbr.rel (%p266) target = $region36
        $region35: #{tpu_custom_call.1} parent=27 // pred_region
          %v270 = vlaneseq
          %vm271 = vcmp.ge.s32.totalorder %v270, 0
          %vm272 = vcmp.lt.s32.totalorder %v270, 256
          %vm273 = vmand %vm271, %vm272
          %274 = vst.msk [vmem:[%s243] sm:$0x3] %vm273, 0.0
        $region36: #{tpu_custom_call.1} parent=27 // pred_fallthru
          _
        %v275 = vld [vmem:[%s212] sm:$0xff]
        %v276 = vld [vmem:[%s258] sm:$0x3]
        %v277 = vunpack.c.0.s8 %v276
        %s278 = smul.u32 %s28, 4
        %v279 = vlaneseq
        %v280 = vshrl.u32 %v279, 7
        %v281 = vstv %s278
        %v282 = vadd.s32 %v281, %v280
        %v283 = vlaneseq
        %v284 = vshrl.u32 %v283, 7
        %v285 = vsub.s32 0, %v284
        %v286 = vrot.slane %v277, %v285
        %v287 = vlaneseq
        %v288 = vshrl.u32 %v287, 7
        %v289 = vsub.s32 4, %v288
        %v290 = vrot.slane %v277, %v289
        %v291 = vlaneseq
        %v292 = vshrl.u32 %v291, 7
        %v293 = vsub.s32 0, %v292
        %v294 = vrot.slane %v286, %v293
        %v295 = vlaneseq
        %v296 = vshrl.u32 %v295, 7
        %v297 = vsub.s32 0, %v296
        %v298 = vrot.slane %v290, %v297
        %vm299 = vcmp.eq.s32.totalorder %v282, %v294
        %vm300 = vcmp.eq.s32.totalorder %v282, %v298
        %v302 = vcombine.high %v275, %v275
        %v304 = vsel %vm299, %v275, 0.0
        %v305 = vsel %vm300, %v302, 0.0
        %vm306 = vcmask 1043456
        %v307 = vsel %vm306, %v304, 0.0
        %v308 = vrot.slane %v307, 4
        %v309 = vadd.f32 %v307, %v308
        %v310 = vrot.slane %v309, 2
        %v311 = vadd.f32 %v309, %v310
        %v312 = vrot.slane %v311, 1
        %v313 = vadd.f32 %v311, %v312
        %v314 = vsel %vm306, %v305, 0.0
        %v315 = vrot.slane %v314, 4
        %v316 = vadd.f32 %v314, %v315
        %v317 = vrot.slane %v316, 2
        %v318 = vadd.f32 %v316, %v317
        %v319 = vrot.slane %v318, 1
        %v320 = vadd.f32 %v318, %v319
        %s321 = sadd.s32 %s26, %s27
        %v322 = vlaneseq
        %v323 = vand.u32 %v322, 127
        %v324 = vadd.s32 %v323, 128
        %s325 = smul.u32 %s321, 256
        %v326 = vstv %s325
        %v327 = vadd.s32 %v326, %v323
        %v328 = vadd.s32 %v326, %v324
        %vm329 = vcmp.lt.s32.totalorder %v327, 256
        %vm330 = vcmp.lt.s32.totalorder %v328, 256
        %v331 = vsel %vm306, %v275, -inf
        %v332 = vrot.slane %v331, 4
        %v333 = vmax.f32 %v331, %v332
        %v334 = vrot.slane %v333, 2
        %v335 = vmax.f32 %v333, %v334
        %v336 = vrot.slane %v335, 1
        %v337 = vmax.f32 %v335, %v336
        %v338 = vsel %vm306, %v302, -inf
        %v339 = vrot.slane %v338, 4
        %v340 = vmax.f32 %v338, %v339
        %v341 = vrot.slane %v340, 2
        %v342 = vmax.f32 %v340, %v341
        %v343 = vrot.slane %v342, 1
        %v344 = vmax.f32 %v342, %v343
        %v347 = vcombine.low %v337, %v344
        %v349 = vsub.f32 %v275, %v347
        %v350 = vmul.f32 %v349, 1.442695
        %v351 = vpow.pop %v350
        %v353 = vcombine.high %v351, %v351
        %v355 = vsel %vm306, %v351, 0.0
        %v356 = vrot.slane %v355, 4
        %v357 = vadd.f32 %v355, %v356
        %v358 = vrot.slane %v357, 2
        %v359 = vadd.f32 %v357, %v358
        %v360 = vrot.slane %v359, 1
        %v361 = vadd.f32 %v359, %v360
        %v362 = vsel %vm306, %v353, 0.0
        %v363 = vrot.slane %v362, 4
        %v364 = vadd.f32 %v362, %v363
        %v365 = vrot.slane %v364, 2
        %v366 = vadd.f32 %v364, %v365
        %v367 = vrot.slane %v366, 1
        %v368 = vadd.f32 %v366, %v367
        %v369 = vlog2.pop %v361
        %v370 = vmul.f32 %v369, 0.6931472
        %v371 = vlog2.pop %v368
        %v372 = vmul.f32 %v371, 0.6931472
        %v373 = vadd.f32 %v370, %v337
        %v374 = vadd.f32 %v372, %v344
        %v375 = vsub.f32 %v373, %v313
        %v376 = vsub.f32 %v374, %v320
        %v377 = vld [vmem:[%s243] sm:$0x3]
        %v378 = vsel %vm329, %v375, 0.0
        %v379 = vsel %vm330, %v376, 0.0
        %v382 = vcombine.low %v378, %v379
        %v384 = vunpack.c.l.s4 1966171168
        %v385 = vunpack.c.0.s8 %v384
        %v386 = vlaneseq
        %v387 = vshrl.u32 %v386, 7
        %v388 = vsub.s32 %v385, %v387
        %v389 = vrot.slane %v382, %v388
        %v391 = vunpack.c.l.s4 1966171168
        %v392 = vunpack.c.0.s8 %v391
        %v393 = vlaneseq
        %v394 = vshrl.u32 %v393, 7
        %v395 = vsub.s32 %v392, %v394
        %v396 = vrot.slane %v389, %v395
        %v398 = vadd.f32 %v377, %v396
        %v399 = vlaneseq
        %vm400 = vcmp.ge.s32.totalorder %v399, 0
        %vm401 = vcmp.lt.s32.totalorder %v399, 256
        %vm402 = vmand %vm400, %vm401
        %403 = vst.msk [vmem:[%s243] sm:$0x3] %vm402, %v398
        %s404 = sand.u32 %s125, 1
        %s405 = scalar_lea.sflag [#allocation4], %s404
        %s406 = sand.u32 %s125, 1
        %s407 = smul.addr %s406, 2
        %s408 = scalar_lea.vmem [#allocation5], %s407
        // Predicated region
        $region37: #{tpu_custom_call.1} parent=27 // pred_check
          %p409 = pneg %p135
        $region38: #{tpu_custom_call.1} parent=27 // pred_check_branch
          %411 = sbr.rel (%p409) target = $region40
        $region39: #{tpu_custom_call.1} parent=27 // pred_region
          %s412 = sadd.s32 %s25, %s26
          %s414 = ssub.s32 32, 32
          %415 = vsyncadd %s405, %s414
          %s416 = smul.addr %s412, 2
          %s417 = smul.addr %s416, 16
          %s418 = scalar_lea.hbm %s2, %s417
          %s420 = sshll.u32 %s408, 4
          %s421 = int_to_ptr.vmem [resolvable:$true] %s420
          %423 = dma.vmem_to_hbm [thread:$0]  %s421, 32, %s418, %s405
        $region40: #{tpu_custom_call.1} parent=27 // pred_fallthru
          _
      $region28: #{tpu_custom_call.1} parent=5 // pred_fallthru
        _
      %p424 = scmp.le.s32.totalorder 2, %s14
      // Predicated region
      $region41: #{tpu_custom_call.1} parent=5 // pred_check
        %p425 = pneg %p424
      $region42: #{tpu_custom_call.1} parent=5 // pred_check_branch
        %427 = sbr.rel (%p425) target = $region44
      $region43: #{tpu_custom_call.1} parent=5 // pred_region
        %s428 = ssub.s32 %s14, 2
        // Predicated region
        $region45: #{tpu_custom_call.1} parent=43 // pred_check
          %p429 = pneg %p141
        $region46: #{tpu_custom_call.1} parent=43 // pred_check_branch
          %431 = sbr.rel (%p429) target = $region48
        $region47: #{tpu_custom_call.1} parent=43 // pred_region
          %s432 = sand.u32 %s126, 1
          %s433 = scalar_lea.sflag [#allocation4], %s432
          %s434 = sand.u32 %s126, 1
          %s435 = smul.addr %s434, 2
          %s436 = scalar_lea.vmem [#allocation5], %s435
          %437 = dma.done %s433, 32
        $region48: #{tpu_custom_call.1} parent=43 // pred_fallthru
          _
      $region44: #{tpu_custom_call.1} parent=5 // pred_fallthru
        _
    $region6: #{tpu_custom_call.1} parent=1 // loop_footer
      %s18 = sadd.s32 1, %s14
    $region7: #{tpu_custom_call.1} parent=1 // loop_footer_branch
      %13 = sbr.rel target = $region3
    $region8: #{tpu_custom_call.1} parent=1 // loop_exit
      _
    %438 = vsyncpa [#allocation3], 1
    %s439 = scalar_lea.sflag [#allocation3], 1
    %440 = vsyncpa %s439, 1
    %441 = vsyncpa [#allocation4], 1
    %s442 = scalar_lea.sflag [#allocation4], 1
    %443 = vsyncpa %s442, 1

</llo_original>
